<compile_context>
chip_gen: v6e
topology: v6e:2x2x1
jax: 0.10.0
libtpu: 0.0.40
codegen_flags: <defaults>
</compile_context>

<pallas_src>
import jax
import jax.numpy as jnp
from jax.experimental import pallas as pl
from jax.experimental.pallas import tpu as pltpu


def _round_up(x, m):
    return (x + m - 1) // m * m


def _vmem_limit(bytes_needed):
    # Explicit scoped-VMEM limit: generous headroom, capped at 32 MiB (safe on v5e/v6e/v7x).
    return int(min(max(2 * bytes_needed, 4 * 1024 * 1024), 32 * 1024 * 1024))


# ----------------------------------------------------------------------------
# Kernel 1: fused LSTM cell step. All operands are small, full VMEM blocks.
#   xh_ref : [B_pad, EH_pad]  bf16   concat([x, h]) (fused input/hidden matmul)
#   c_ref  : [B_pad, H_pad]   f32    previous cell state
#   wg_ref : [EH_pad, 4*H_pad] bf16  fused gate weight, gate g lives in cols [g*H_pad, g*H_pad+H)
#   bg_ref : [1, 4*H_pad]     f32    b_ih + b_hh, gate-padded the same way
#   outs   : h_new [B_pad, H_pad] f32, c_new [B_pad, H_pad] f32 (c aliased in place)
# ----------------------------------------------------------------------------
def _lstm_cell_kernel(xh_ref, c_ref, wg_ref, bg_ref, h_out_ref, c_out_ref):
    Hp = c_ref.shape[1]  # padded hidden size (multiple of 128 -> lane-aligned gate slices)

    gates = (jnp.dot(xh_ref[...], wg_ref[...], preferred_element_type=jnp.float32)
             + bg_ref[...])

    i = jax.nn.sigmoid(gates[:, 0 * Hp:1 * Hp])
    f = jax.nn.sigmoid(gates[:, 1 * Hp:2 * Hp])
    g = jnp.tanh(gates[:, 2 * Hp:3 * Hp])
    o = jax.nn.sigmoid(gates[:, 3 * Hp:4 * Hp])

    c_new = f * c_ref[...] + i * g
    h_new = o * jnp.tanh(c_new)

    c_out_ref[...] = c_new
    h_out_ref[...] = h_new


# ----------------------------------------------------------------------------
# Kernel 2: fc_out projection, tiled over the vocab axis (grid=(V_pad // TV,)).
#   h_ref   : [B_pad, H_pad] f32   resident across the grid
#   wfc_ref : [H_pad, TV]    bf16  streamed / double-buffered weight tile
#   bfc_ref : [1, TV]        f32
#   pred_ref: [B_pad, TV]    f32   lane-dense output tile
# ----------------------------------------------------------------------------
def _fc_proj_kernel(h_ref, wfc_ref, bfc_ref, pred_ref):
    h = h_ref[...].astype(wfc_ref.dtype)
    pred_ref[...] = (jnp.dot(h, wfc_ref[...], preferred_element_type=jnp.float32)
                     + bfc_ref[...])


# ----------------------------------------------------------------------------
# Parameter creation (module-shaped, f32) and one-time packing for the kernels.
# ----------------------------------------------------------------------------
def init_decoder_params(key, output_dim, emb_dim, hid_dim):
    """Deterministic synthetic parameters with the same shapes as the PyTorch module."""
    ks = jax.random.split(key, 7)
    scale = 0.1
    return {
        # nn.Embedding(output_dim, emb_dim)
        "embedding": scale * jax.random.normal(ks[0], (output_dim, emb_dim), jnp.float32),
        # nn.LSTM(emb_dim, hid_dim): weight_ih_l0 [4H, E], weight_hh_l0 [4H, H], stored transposed.
        "w_ih_t": scale * jax.random.normal(ks[1], (emb_dim, 4 * hid_dim), jnp.float32),
        "w_hh_t": scale * jax.random.normal(ks[2], (hid_dim, 4 * hid_dim), jnp.float32),
        # combined bias b_ih + b_hh
        "b_gates": (scale * jax.random.normal(ks[3], (1, 4 * hid_dim), jnp.float32)
                    + scale * jax.random.normal(ks[4], (1, 4 * hid_dim), jnp.float32)),
        # nn.Linear(hid_dim, output_dim): weight [V, H] stored transposed.
        "w_fc_t": scale * jax.random.normal(ks[5], (hid_dim, output_dim), jnp.float32),
        "b_fc": scale * jax.random.normal(ks[6], (1, output_dim), jnp.float32),
    }


def pack_decoder_params(params, *, max_v_tile=1024):
    """One-time re-layout: fuse/pad/transpose weights and cast them to bf16."""
    emb = params["embedding"]          # [V, E]
    w_ih_t = params["w_ih_t"]          # [E, 4H]
    w_hh_t = params["w_hh_t"]          # [H, 4H]
    b_gates = params["b_gates"]        # [1, 4H]
    w_fc_t = params["w_fc_t"]          # [H, V]
    b_fc = params["b_fc"]              # [1, V]

    V, E = emb.shape
    H = w_hh_t.shape[0]
    EH = E + H
    EH_pad = _round_up(EH, 128)
    H_pad = _round_up(H, 128)

    # Fused, gate-padded gate weight / bias so every gate slice is lane-aligned.
    w_gates = jnp.zeros((EH_pad, 4 * H_pad), jnp.float32)
    b_g = jnp.zeros((1, 4 * H_pad), jnp.float32)
    for g in range(4):
        w_gates = w_gates.at[:E, g * H_pad:g * H_pad + H].set(w_ih_t[:, g * H:(g + 1) * H])
        w_gates = w_gates.at[E:EH, g * H_pad:g * H_pad + H].set(w_hh_t[:, g * H:(g + 1) * H])
        b_g = b_g.at[:, g * H_pad:g * H_pad + H].set(b_gates[:, g * H:(g + 1) * H])

    # Vocab tile: large multiple of 128, capped so the double-buffered bf16
    # weight tile stays well inside VMEM on every generation (incl. v7x 64 MiB).
    V128 = _round_up(V, 128)
    tv_vmem_cap = max(128, (8 * 1024 * 1024 // (4 * H_pad)) // 128 * 128)
    TV = min(max_v_tile, V128, tv_vmem_cap)
    V_pad = _round_up(V, TV)

    w_fc = jnp.zeros((H_pad, V_pad), jnp.float32).at[:H, :V].set(w_fc_t)
    b_fc_p = jnp.zeros((1, V_pad), jnp.float32).at[:, :V].set(b_fc)

    return {
        "emb": emb.astype(jnp.bfloat16),
        "w_gates": w_gates.astype(jnp.bfloat16),
        "b_gates": b_g,
        "w_fc": w_fc.astype(jnp.bfloat16),
        "b_fc": b_fc_p,
        "dims": dict(E=E, H=H, V=V, EH=EH, EH_pad=EH_pad, H_pad=H_pad,
                     V_pad=V_pad, TV=TV),
    }


# ----------------------------------------------------------------------------
# Forward wrapper.
# ----------------------------------------------------------------------------
def decoder_forward(token_ids, hidden, cell, packed):
    """token_ids: [B] int32; hidden/cell: [1, B, H]. Returns (pred [B, V], hidden', cell')."""
    d = packed["dims"]
    E, H, V = d["E"], d["H"], d["V"]
    EH, EH_pad, H_pad = d["EH"], d["EH_pad"], d["H_pad"]
    V_pad, TV = d["V_pad"], d["TV"]

    B = token_ids.shape[0]
    B_pad = _round_up(max(B, 8), 8)

    # Embedding lookup (+ eval-mode dropout == identity).
    x = jnp.take(packed["emb"], token_ids, axis=0)            # [B, E] bf16
    h0 = hidden[0]                                            # [B, H] f32
    c0 = cell[0]                                              # [B, H] f32

    # Fused, padded [x | h] operand for a single gate matmul.
    xh = jnp.zeros((B_pad, EH_pad), jnp.bfloat16)
    xh = xh.at[:B, :E].set(x)
    xh = xh.at[:B, E:EH].set(h0.astype(jnp.bfloat16))

    c0_pad = jnp.zeros((B_pad, H_pad), jnp.float32).at[:B, :H].set(c0)

    # ---- LSTM cell step ----------------------------------------------------
    vmem1 = _vmem_limit(xh.size * 2 + c0_pad.size * 4
                        + packed["w_gates"].size * 2 + packed["b_gates"].size * 4
                        + 2 * B_pad * H_pad * 4)
    h_new_p, c_new_p = pl.pallas_call(
        _lstm_cell_kernel,
        out_shape=(jax.ShapeDtypeStruct((B_pad, H_pad), jnp.float32),
                   jax.ShapeDtypeStruct((B_pad, H_pad), jnp.float32)),
        in_specs=[pl.BlockSpec(memory_space=pltpu.MemorySpace.VMEM)] * 4,
        out_specs=(pl.BlockSpec(memory_space=pltpu.MemorySpace.VMEM),
                   pl.BlockSpec(memory_space=pltpu.MemorySpace.VMEM)),
        input_output_aliases={1: 1},   # update the cell-state buffer in place
        compiler_params=pltpu.CompilerParams(vmem_limit_bytes=vmem1),
    )(xh, c0_pad, packed["w_gates"], packed["b_gates"])

    # ---- fc_out projection, tiled over the vocab axis -----------------------
    num_v_tiles = V_pad // TV
    vmem2 = _vmem_limit(B_pad * H_pad * 4
                        + 2 * (H_pad * TV * 2 + TV * 4 + B_pad * TV * 4))
    pred_p = pl.pallas_call(
        _fc_proj_kernel,
        out_shape=jax.ShapeDtypeStruct((B_pad, V_pad), jnp.float32),
        grid=(num_v_tiles,),
        in_specs=[pl.BlockSpec((B_pad, H_pad), lambda j: (0, 0)),   # h': resident
                  pl.BlockSpec((H_pad, TV), lambda j: (0, j)),      # streamed weight tile
                  pl.BlockSpec((1, TV), lambda j: (0, j))],         # bias tile
        out_specs=pl.BlockSpec((B_pad, TV), lambda j: (0, j)),
        compiler_params=pltpu.CompilerParams(
            dimension_semantics=("parallel",),   # independent vocab tiles (v7x 2-TC sharding)
            vmem_limit_bytes=vmem2),
    )(h_new_p, packed["w_fc"], packed["b_fc"])

    pred = pred_p[:B, :V]
    h_new = h_new_p[:B, :H][None]
    c_new = c_new_p[:B, :H][None]
    return pred, h_new, c_new


# ----------------------------------------------------------------------------
# Pure-JAX f32 reference mirroring torch.nn.LSTM single-step math.
# ----------------------------------------------------------------------------
def _reference_forward(token_ids, hidden, cell, params):
    x = jnp.take(params["embedding"], token_ids, axis=0)
    h, c = hidden[0], cell[0]
    H = h.shape[1]
    gates = x @ params["w_ih_t"] + h @ params["w_hh_t"] + params["b_gates"]
    i = jax.nn.sigmoid(gates[:, 0 * H:1 * H])
    f = jax.nn.sigmoid(gates[:, 1 * H:2 * H])
    g = jnp.tanh(gates[:, 2 * H:3 * H])
    o = jax.nn.sigmoid(gates[:, 3 * H:4 * H])
    c_new = f * c + i * g
    h_new = o * jnp.tanh(c_new)
    pred = h_new @ params["w_fc_t"] + params["b_fc"]
    return pred, h_new[None], c_new[None]


if __name__ == "__main__":
    # Small, module-consistent shapes.
    batch = 2
    output_dim = 64   # vocabulary size
    emb_dim = 32
    hid_dim = 32

    key = jax.random.PRNGKey(0)
    kp, kt, kh, kc = jax.random.split(key, 4)

    params = init_decoder_params(kp, output_dim, emb_dim, hid_dim)
    packed = pack_decoder_params(params)

    token_ids = jax.random.randint(kt, (batch,), 0, output_dim, dtype=jnp.int32)
    hidden = 0.1 * jax.random.normal(kh, (1, batch, hid_dim), jnp.float32)
    cell = 0.1 * jax.random.normal(kc, (1, batch, hid_dim), jnp.float32)

    pred, h_new, c_new = decoder_forward(token_ids, hidden, cell, packed)
    jax.block_until_ready((pred, h_new, c_new))

    pred_ref, h_ref, c_ref = _reference_forward(token_ids, hidden, cell, params)
    assert pred.shape == (batch, output_dim)
    assert h_new.shape == (1, batch, hid_dim)
    assert c_new.shape == (1, batch, hid_dim)
    # Kernel path uses bf16 weights (f32 accumulation); reference is pure f32.
    assert jnp.allclose(pred, pred_ref, rtol=2e-2, atol=2e-2)
    assert jnp.allclose(h_new, h_ref, rtol=2e-2, atol=2e-2)
    assert jnp.allclose(c_new, c_ref, rtol=2e-2, atol=2e-2)

    print("KERNEL_OK")
</pallas_src>

<mosaic_0001>
module attributes {stable_mosaic.version = 11 : i64} {
  func.func @_lstm_cell_kernel(%arg0: memref<8x128xbf16, #tpu.memory_space<vmem>>, %arg1: memref<8x128xf32, #tpu.memory_space<vmem>>, %arg2: memref<128x512xbf16, #tpu.memory_space<vmem>>, %arg3: memref<1x512xf32, #tpu.memory_space<vmem>>, %arg4: memref<8x128xf32, #tpu.memory_space<vmem>>, %arg5: memref<8x128xf32, #tpu.memory_space<vmem>>) attributes {dimension_semantics = [], scalar_prefetch = 0 : i64, scratch_operands = 0 : i64, tpu.core_type = #tpu.core_type<tc>} {
    %c0 = arith.constant 0 : index
    %c0_0 = arith.constant 0 : index
    %0 = vector.load %arg0[%c0, %c0_0] : memref<8x128xbf16, #tpu.memory_space<vmem>>, vector<8x128xbf16>
    %c0_1 = arith.constant 0 : index
    %c0_2 = arith.constant 0 : index
    %1 = vector.load %arg2[%c0_1, %c0_2] : memref<128x512xbf16, #tpu.memory_space<vmem>>, vector<128x512xbf16>
    %cst = arith.constant dense<0.000000e+00> : vector<8x512xf32>
    %2 = tpu.matmul %0, %1, %cst {dimension_numbers = #tpu.dot_dimension_numbers<[1], [0], [0], [1], [0, 0, 1, 1], [], []>} : vector<8x128xbf16>, vector<128x512xbf16>, vector<8x512xf32> -> vector<8x512xf32>
    %c0_3 = arith.constant 0 : index
    %c0_4 = arith.constant 0 : index
    %3 = vector.load %arg3[%c0_3, %c0_4] : memref<1x512xf32, #tpu.memory_space<vmem>>, vector<1x512xf32>
    %4 = vector.broadcast %3 : vector<1x512xf32> to vector<8x512xf32>
    %5 = arith.addf %2, %4 : vector<8x512xf32>
    %6 = vector.extract_strided_slice %5 {offsets = [0, 0], sizes = [8, 128], strides = [1, 1]} : vector<8x512xf32> to vector<8x128xf32>
    %7 = arith.negf %6 : vector<8x128xf32>
    %8 = math.exp %7 : vector<8x128xf32>
    %cst_5 = arith.constant 1.000000e+00 : f32
    %9 = vector.broadcast %cst_5 : f32 to vector<8x128xf32>
    %10 = arith.addf %9, %8 : vector<8x128xf32>
    %11 = arith.divf %9, %10 : vector<8x128xf32>
    %12 = vector.extract_strided_slice %5 {offsets = [0, 128], sizes = [8, 128], strides = [1, 1]} : vector<8x512xf32> to vector<8x128xf32>
    %13 = arith.negf %12 : vector<8x128xf32>
    %14 = math.exp %13 : vector<8x128xf32>
    %cst_6 = arith.constant 1.000000e+00 : f32
    %15 = vector.broadcast %cst_6 : f32 to vector<8x128xf32>
    %16 = arith.addf %15, %14 : vector<8x128xf32>
    %17 = arith.divf %15, %16 : vector<8x128xf32>
    %18 = vector.extract_strided_slice %5 {offsets = [0, 256], sizes = [8, 128], strides = [1, 1]} : vector<8x512xf32> to vector<8x128xf32>
    %19 = math.tanh %18 : vector<8x128xf32>
    %20 = vector.extract_strided_slice %5 {offsets = [0, 384], sizes = [8, 128], strides = [1, 1]} : vector<8x512xf32> to vector<8x128xf32>
    %21 = arith.negf %20 : vector<8x128xf32>
    %22 = math.exp %21 : vector<8x128xf32>
    %cst_7 = arith.constant 1.000000e+00 : f32
    %23 = vector.broadcast %cst_7 : f32 to vector<8x128xf32>
    %24 = arith.addf %23, %22 : vector<8x128xf32>
    %25 = arith.divf %23, %24 : vector<8x128xf32>
    %c0_8 = arith.constant 0 : index
    %c0_9 = arith.constant 0 : index
    %26 = vector.load %arg1[%c0_8, %c0_9] : memref<8x128xf32, #tpu.memory_space<vmem>>, vector<8x128xf32>
    %27 = arith.mulf %17, %26 : vector<8x128xf32>
    %28 = arith.mulf %11, %19 : vector<8x128xf32>
    %29 = arith.addf %27, %28 : vector<8x128xf32>
    %30 = math.tanh %29 : vector<8x128xf32>
    %31 = arith.mulf %25, %30 : vector<8x128xf32>
    %c0_10 = arith.constant 0 : index
    %c0_11 = arith.constant 0 : index
    %32 = vector.load %arg5[%c0_10, %c0_11] : memref<8x128xf32, #tpu.memory_space<vmem>>, vector<8x128xf32>
    tpu.vector_store %arg5[%c0_10, %c0_11], %29 {strides = array<i32>} : memref<8x128xf32, #tpu.memory_space<vmem>>, vector<8x128xf32>,
    %c0_12 = arith.constant 0 : index
    %c0_13 = arith.constant 0 : index
    %33 = vector.load %arg4[%c0_12, %c0_13] : memref<8x128xf32, #tpu.memory_space<vmem>>, vector<8x128xf32>
    tpu.vector_store %arg4[%c0_12, %c0_13], %31 {strides = array<i32>} : memref<8x128xf32, #tpu.memory_space<vmem>>, vector<8x128xf32>,
    return
  }
}

</mosaic_0001>

<llo_original>
// kernel: tpu_custom_call.1
$region0: #{tpu_custom_call.1}
  #allocation0 [shape = 'u32[]', space=smem, size = 0x4, offset = 0x4, fixed_abs, tag = 'smem constant byte address 0x4 - core index']
  #allocation1 [shape = 'u32[144,128]{1,0:T(1,128)}', space=vmem, size = 0x12000, scoped, tag = 'internal scratch']
  %s0 = inlined_call_operand.vmem [shape: bf16[8,128], index: 0, kind: input, shape index: {}]
  %s1 = inlined_call_operand.hbm [shape: f32[8,128], index: 1, kind: input, shape index: {}, may-alias: {1,5}]
  %s2 = inlined_call_operand.hbm [shape: bf16[128,512], index: 2, kind: input, shape index: {}]
  %s3 = inlined_call_operand.vmem [shape: f32[1,512], index: 3, kind: input, shape index: {}]
  %s4 = inlined_call_operand.hbm [shape: f32[8,128], index: 4, kind: output, shape index: {0}]
  %s5 = inlined_call_operand.hbm [shape: f32[8,128], index: 5, kind: output, shape index: {1}, may-alias: {1,5}]
  %6 = xla_tuple %s4, %s5
  %s7 = sld [smem:[#allocation0]]
  $region42: #{tpu_custom_call.1} parent=0
    _
  %s9 = ssub.s32 1, %s7
  %s10 = scalar_select 0, %s9, %s7
  $region1: #{tpu_custom_call.1} parent=0
    #allocation2 [shape = 'u8[4096]{0}', space=vmem, size = 0x1000, scoped, tag = 'input window, operand 1, single buffered']
    #allocation3 [shape = 's32[1]{0}', space=sflag, size = 0x4, scoped, tag = 'scoped memory for tpu_custom_call.1']
    #allocation4 [shape = 's32[1]{0}', space=sflag, size = 0x4, scoped, tag = 'scoped memory for tpu_custom_call.1']
    #allocation5 [shape = 'u8[131072]{0}', space=vmem, size = 0x20000, scoped, tag = 'input window, operand 2, single buffered']
    #allocation6 [shape = 's32[1]{0}', space=sflag, size = 0x4, scoped, tag = 'scoped memory for tpu_custom_call.1']
    #allocation7 [shape = 'u8[4096]{0}', space=vmem, size = 0x1000, scoped, tag = 'output window, operand 0, single buffered']
    #allocation8 [shape = 'u8[4096]{0}', space=vmem, size = 0x1000, scoped, tag = 'output window, operand 1, single buffered']
    #allocation9 [shape = 's32[1]{0}', space=sflag, size = 0x4, scoped, tag = 'scoped memory for tpu_custom_call.1']
    %11 = vsyncpa [#allocation3], 0
    %12 = vsyncpa [#allocation6], 0
    %13 = vsyncpa [#allocation4], 0
    %14 = vsyncpa [#allocation9], 0
    // Predicated region
    $region2: #{tpu_custom_call.1} parent=1 // pred_check
      _
    $region3: #{tpu_custom_call.1} parent=1 // pred_check_branch
      %16 = sbr.rel (0) target = $region5
    $region4: #{tpu_custom_call.1} parent=1 // pred_region
      _
    $region5: #{tpu_custom_call.1} parent=1 // pred_fallthru
      _
    // Predicated region
    $region6: #{tpu_custom_call.1} parent=1 // pred_check
      _
    $region7: #{tpu_custom_call.1} parent=1 // pred_check_branch
      %18 = sbr.rel (0) target = $region9
    $region8: #{tpu_custom_call.1} parent=1 // pred_region
      %s20 = ssub.s32 128, 128
      %21 = vsyncadd [#allocation3], %s20
      %s23 = sshll.u32 [#allocation2], 4
      %s24 = int_to_ptr.vmem [resolvable:$true] %s23
      %26 = dma.hbm_to_vmem [thread:$0]  %s1, 128, %s24, [#allocation3]
    $region9: #{tpu_custom_call.1} parent=1 // pred_fallthru
      _
    // Predicated region
    $region10: #{tpu_custom_call.1} parent=1 // pred_check
      _
    $region11: #{tpu_custom_call.1} parent=1 // pred_check_branch
      %28 = sbr.rel (0) target = $region13
    $region12: #{tpu_custom_call.1} parent=1 // pred_region
      %s30 = ssub.s32 4096, 4096
      %31 = vsyncadd [#allocation6], %s30
      %s32 = sshll.u32 [#allocation5], 4
      %s33 = int_to_ptr.vmem [resolvable:$true] %s32
      %38 = dma.hbm_to_vmem [thread:$0]  %s2, 4096, %s33, [#allocation6], 256, 256, 16
    $region13: #{tpu_custom_call.1} parent=1 // pred_fallthru
      _
    // Predicated region
    $region14: #{tpu_custom_call.1} parent=1 // pred_check
      _
    $region15: #{tpu_custom_call.1} parent=1 // pred_check_branch
      %40 = sbr.rel (0) target = $region17
    $region16: #{tpu_custom_call.1} parent=1 // pred_region
      _
    $region17: #{tpu_custom_call.1} parent=1 // pred_fallthru
      _
    // Predicated region
    $region18: #{tpu_custom_call.1} parent=1 // pred_check
      _
    $region19: #{tpu_custom_call.1} parent=1 // pred_check_branch
      %42 = sbr.rel (0) target = $region21
    $region20: #{tpu_custom_call.1} parent=1 // pred_region
      %43 = dma.done [#allocation3], 128
    $region21: #{tpu_custom_call.1} parent=1 // pred_fallthru
      _
    // Predicated region
    $region22: #{tpu_custom_call.1} parent=1 // pred_check
      _
    $region23: #{tpu_custom_call.1} parent=1 // pred_check_branch
      %45 = sbr.rel (0) target = $region25
    $region24: #{tpu_custom_call.1} parent=1 // pred_region
      %46 = dma.done [#allocation6], 4096
    $region25: #{tpu_custom_call.1} parent=1 // pred_fallthru
      _
    %v48 = vld [vmem:[%s0] sm:$0xf]
    %v49 = vld [vmem:[#allocation5] sm:$0xff]
    %v50 = vld [vmem:[#allocation5 + $0x8] sm:$0xff]
    %v51 = vld [vmem:[#allocation5 + $0x10] sm:$0xff]
    %v52 = vld [vmem:[#allocation5 + $0x18] sm:$0xff]
    %v53 = vld [vmem:[#allocation5 + $0x20] sm:$0xff]
    %v54 = vld [vmem:[#allocation5 + $0x28] sm:$0xff]
    %v55 = vld [vmem:[#allocation5 + $0x30] sm:$0xff]
    %v56 = vld [vmem:[#allocation5 + $0x38] sm:$0xff]
    %v57 = vld [vmem:[#allocation5 + $0x40] sm:$0xff]
    %v58 = vld [vmem:[#allocation5 + $0x48] sm:$0xff]
    %v59 = vld [vmem:[#allocation5 + $0x50] sm:$0xff]
    %v60 = vld [vmem:[#allocation5 + $0x58] sm:$0xff]
    %v61 = vld [vmem:[#allocation5 + $0x60] sm:$0xff]
    %v62 = vld [vmem:[#allocation5 + $0x68] sm:$0xff]
    %v63 = vld [vmem:[#allocation5 + $0x70] sm:$0xff]
    %v64 = vld [vmem:[#allocation5 + $0x78] sm:$0xff]
    %v65 = vld [vmem:[#allocation5 + $0x80] sm:$0xff]
    %v66 = vld [vmem:[#allocation5 + $0x88] sm:$0xff]
    %v67 = vld [vmem:[#allocation5 + $0x90] sm:$0xff]
    %v68 = vld [vmem:[#allocation5 + $0x98] sm:$0xff]
    %v69 = vld [vmem:[#allocation5 + $0xa0] sm:$0xff]
    %v70 = vld [vmem:[#allocation5 + $0xa8] sm:$0xff]
    %v71 = vld [vmem:[#allocation5 + $0xb0] sm:$0xff]
    %v72 = vld [vmem:[#allocation5 + $0xb8] sm:$0xff]
    %v73 = vld [vmem:[#allocation5 + $0xc0] sm:$0xff]
    %v74 = vld [vmem:[#allocation5 + $0xc8] sm:$0xff]
    %v75 = vld [vmem:[#allocation5 + $0xd0] sm:$0xff]
    %v76 = vld [vmem:[#allocation5 + $0xd8] sm:$0xff]
    %v77 = vld [vmem:[#allocation5 + $0xe0] sm:$0xff]
    %v78 = vld [vmem:[#allocation5 + $0xe8] sm:$0xff]
    %v79 = vld [vmem:[#allocation5 + $0xf0] sm:$0xff]
    %v80 = vld [vmem:[#allocation5 + $0xf8] sm:$0xff]
    %v81 = vld [vmem:[%s3] sm:$0xf]
    %v83 = vlaneseq
    %v84 = vshrl.u32 %v83, 7
    %v85 = vsub.s32 0, %v84
    %v86 = vrot.slane %v81, %v85
    %v87 = vlaneseq
    %v88 = vshrl.u32 %v87, 7
    %v89 = vsub.s32 1, %v88
    %v90 = vrot.slane %v81, %v89
    %v91 = vlaneseq
    %v92 = vshrl.u32 %v91, 7
    %v93 = vsub.s32 2, %v92
    %v94 = vrot.slane %v81, %v93
    %v95 = vlaneseq
    %v96 = vshrl.u32 %v95, 7
    %v97 = vsub.s32 3, %v96
    %v98 = vrot.slane %v81, %v97
    %v135 = vunpack.c.l.b16 %v49
    %v136 = vunpack.c.h.b16 %v49
    %v137 = vunpack.c.l.b16 %v50
    %v138 = vunpack.c.h.b16 %v50
    %v139 = vunpack.c.l.b16 %v51
    %v140 = vunpack.c.h.b16 %v51
    %v141 = vunpack.c.l.b16 %v52
    %v142 = vunpack.c.h.b16 %v52
    %v143 = vunpack.c.l.b16 %v53
    %v144 = vunpack.c.h.b16 %v53
    %v145 = vunpack.c.l.b16 %v54
    %v146 = vunpack.c.h.b16 %v54
    %v147 = vunpack.c.l.b16 %v55
    %v148 = vunpack.c.h.b16 %v55
    %v149 = vunpack.c.l.b16 %v56
    %v150 = vunpack.c.h.b16 %v56
    %v151 = vunpack.c.l.b16 %v57
    %v152 = vunpack.c.h.b16 %v57
    %v153 = vunpack.c.l.b16 %v58
    %v154 = vunpack.c.h.b16 %v58
    %v155 = vunpack.c.l.b16 %v59
    %v156 = vunpack.c.h.b16 %v59
    %v157 = vunpack.c.l.b16 %v60
    %v158 = vunpack.c.h.b16 %v60
    %v159 = vunpack.c.l.b16 %v61
    %v160 = vunpack.c.h.b16 %v61
    %v161 = vunpack.c.l.b16 %v62
    %v162 = vunpack.c.h.b16 %v62
    %v163 = vunpack.c.l.b16 %v63
    %v164 = vunpack.c.h.b16 %v63
    %v165 = vunpack.c.l.b16 %v64
    %v166 = vunpack.c.h.b16 %v64
    %v167 = vunpack.c.l.b16 %v65
    %v168 = vunpack.c.h.b16 %v65
    %v169 = vunpack.c.l.b16 %v66
    %v170 = vunpack.c.h.b16 %v66
    %v171 = vunpack.c.l.b16 %v67
    %v172 = vunpack.c.h.b16 %v67
    %v173 = vunpack.c.l.b16 %v68
    %v174 = vunpack.c.h.b16 %v68
    %v175 = vunpack.c.l.b16 %v69
    %v176 = vunpack.c.h.b16 %v69
    %v177 = vunpack.c.l.b16 %v70
    %v178 = vunpack.c.h.b16 %v70
    %v179 = vunpack.c.l.b16 %v71
    %v180 = vunpack.c.h.b16 %v71
    %v181 = vunpack.c.l.b16 %v72
    %v182 = vunpack.c.h.b16 %v72
    %v183 = vunpack.c.l.b16 %v73
    %v184 = vunpack.c.h.b16 %v73
    %v185 = vunpack.c.l.b16 %v74
    %v186 = vunpack.c.h.b16 %v74
    %v187 = vunpack.c.l.b16 %v75
    %v188 = vunpack.c.h.b16 %v75
    %v189 = vunpack.c.l.b16 %v76
    %v190 = vunpack.c.h.b16 %v76
    %v191 = vunpack.c.l.b16 %v77
    %v192 = vunpack.c.h.b16 %v77
    %v193 = vunpack.c.l.b16 %v78
    %v194 = vunpack.c.h.b16 %v78
    %v195 = vunpack.c.l.b16 %v79
    %v196 = vunpack.c.h.b16 %v79
    %v197 = vunpack.c.l.b16 %v80
    %v198 = vunpack.c.h.b16 %v80
    %v199 = vpack.c.b16 %v139, %v135
    %v200 = vpack.c.b16 %v140, %v136
    %v201 = vpack.c.b16 %v141, %v137
    %v202 = vpack.c.b16 %v142, %v138
    %v203 = vpack.c.b16 %v147, %v143
    %v204 = vpack.c.b16 %v148, %v144
    %v205 = vpack.c.b16 %v149, %v145
    %v206 = vpack.c.b16 %v150, %v146
    %v207 = vpack.c.b16 %v155, %v151
    %v208 = vpack.c.b16 %v156, %v152
    %v209 = vpack.c.b16 %v157, %v153
    %v210 = vpack.c.b16 %v158, %v154
    %v211 = vpack.c.b16 %v163, %v159
    %v212 = vpack.c.b16 %v164, %v160
    %v213 = vpack.c.b16 %v165, %v161
    %v214 = vpack.c.b16 %v166, %v162
    %v215 = vpack.c.b16 %v171, %v167
    %v216 = vpack.c.b16 %v172, %v168
    %v217 = vpack.c.b16 %v173, %v169
    %v218 = vpack.c.b16 %v174, %v170
    %v219 = vpack.c.b16 %v179, %v175
    %v220 = vpack.c.b16 %v180, %v176
    %v221 = vpack.c.b16 %v181, %v177
    %v222 = vpack.c.b16 %v182, %v178
    %v223 = vpack.c.b16 %v187, %v183
    %v224 = vpack.c.b16 %v188, %v184
    %v225 = vpack.c.b16 %v189, %v185
    %v226 = vpack.c.b16 %v190, %v186
    %v227 = vpack.c.b16 %v195, %v191
    %v228 = vpack.c.b16 %v196, %v192
    %v229 = vpack.c.b16 %v197, %v193
    %v230 = vpack.c.b16 %v198, %v194
    %263 = vmatprep.subr.bf16.mxu0 %v228
    %264 = vmatpush1.bf16.msra.mxu0 %v227
    %265 = vmatprep.subr.bf16.mxu0 %v224
    %266 = vmatpush1.bf16.msra.mxu0 %v223
    %267 = vmatprep.subr.bf16.mxu0 %v220
    %268 = vmatpush1.bf16.msra.mxu0 %v219
    %269 = vmatprep.subr.bf16.mxu0 %v216
    %270 = vmatpush1.bf16.msra.mxu0 %v215
    %271 = vmatprep.subr.bf16.mxu0 %v212
    %272 = vmatpush1.bf16.msra.mxu0 %v211
    %273 = vmatprep.subr.bf16.mxu0 %v208
    %274 = vmatpush1.bf16.msra.mxu0 %v207
    %275 = vmatprep.subr.bf16.mxu0 %v204
    %276 = vmatpush1.bf16.msra.mxu0 %v203
    %277 = vmatprep.subr.bf16.mxu0 %v200
    %278 = vmatpush1.bf16.msra.mxu0 %v199
    %279 = vmatprep.subr.bf16.mxu0 0
    %280 = vmatpush2.bf16.msra.mxu0 0
    %281 = vmatprep.subr.bf16.mxu0 0
    %282 = vmatpush2.bf16.msra.mxu0 0
    %283 = vmatprep.subr.bf16.mxu0 0
    %284 = vmatpush2.bf16.msra.mxu0 0
    %285 = vmatprep.subr.bf16.mxu0 0
    %286 = vmatpush2.bf16.msra.mxu0 0
    %287 = vmatprep.subr.bf16.mxu0 0
    %288 = vmatpush2.bf16.msra.mxu0 0
    %289 = vmatprep.subr.bf16.mxu0 0
    %290 = vmatpush2.bf16.msra.mxu0 0
    %291 = vmatprep.subr.bf16.mxu0 0
    %292 = vmatpush2.bf16.msra.mxu0 0
    %293 = vmatprep.subr.bf16.mxu0 0
    %294 = vmatpush2.bf16.msra.mxu0 0
    %295 = vmatprep.mubr.bf16.mxu0 0
    %296 = vmatmul.mubr.bf16.gmra.mxu0 %v48
    %v297 = vpop.f32.mrf.mxu0
    %v298 = vadd.f32 %v86, %v297
    %v299 = vpop.f32.mrf.mxu0
    %v300 = vadd.f32 %v90, %v299
    %v301 = vpop.f32.mrf.mxu0
    %v302 = vpop.f32.mrf.mxu0
    %303 = vdwg.mxu0
    %304 = vmatprep.subr.bf16.mxu0 %v230
    %305 = vmatpush1.bf16.msra.mxu0 %v229
    %306 = vmatprep.subr.bf16.mxu0 %v226
    %307 = vmatpush1.bf16.msra.mxu0 %v225
    %308 = vmatprep.subr.bf16.mxu0 %v222
    %309 = vmatpush1.bf16.msra.mxu0 %v221
    %310 = vmatprep.subr.bf16.mxu0 %v218
    %311 = vmatpush1.bf16.msra.mxu0 %v217
    %312 = vmatprep.subr.bf16.mxu0 %v214
    %313 = vmatpush1.bf16.msra.mxu0 %v213
    %314 = vmatprep.subr.bf16.mxu0 %v210
    %315 = vmatpush1.bf16.msra.mxu0 %v209
    %316 = vmatprep.subr.bf16.mxu0 %v206
    %317 = vmatpush1.bf16.msra.mxu0 %v205
    %318 = vmatprep.subr.bf16.mxu0 %v202
    %319 = vmatpush1.bf16.msra.mxu0 %v201
    %320 = vmatprep.subr.bf16.mxu0 0
    %321 = vmatpush2.bf16.msra.mxu0 0
    %322 = vmatprep.subr.bf16.mxu0 0
    %323 = vmatpush2.bf16.msra.mxu0 0
    %324 = vmatprep.subr.bf16.mxu0 0
    %325 = vmatpush2.bf16.msra.mxu0 0
    %326 = vmatprep.subr.bf16.mxu0 0
    %327 = vmatpush2.bf16.msra.mxu0 0
    %328 = vmatprep.subr.bf16.mxu0 0
    %329 = vmatpush2.bf16.msra.mxu0 0
    %330 = vmatprep.subr.bf16.mxu0 0
    %331 = vmatpush2.bf16.msra.mxu0 0
    %332 = vmatprep.subr.bf16.mxu0 0
    %333 = vmatpush2.bf16.msra.mxu0 0
    %334 = vmatprep.subr.bf16.mxu0 0
    %335 = vmatpush2.bf16.msra.mxu0 0
    %336 = vmatprep.mubr.bf16.mxu0 0
    %337 = vmatmul.mubr.bf16.gmra.mxu0 %v48
    %v338 = vpop.f32.mrf.mxu0
    %v339 = vadd.f32 %v94, %v338
    %v340 = vpop.f32.mrf.mxu0
    %v341 = vadd.f32 %v98, %v340
    %v342 = vpop.f32.mrf.mxu0
    %v343 = vpop.f32.mrf.mxu0
    %344 = vdwg.mxu0
    %v345 = vxor.u32 %v298, 2147483648
    %v346 = vmul.f32 %v345, 1.442695
    %v347 = vpow.pop %v346
    %v348 = vadd.f32 %v347, 1.0
    %v349 = vrcp.pop %v348
    %v350 = vmul.f32 1.0, %v349
    %v351 = vxor.u32 %v300, 2147483648
    %v352 = vmul.f32 %v351, 1.442695
    %v353 = vpow.pop %v352
    %v354 = vadd.f32 %v353, 1.0
    %v355 = vrcp.pop %v354
    %v356 = vmul.f32 1.0, %v355
    %v357 = vtanh.pop %v339
    %v358 = vxor.u32 %v341, 2147483648
    %v359 = vmul.f32 %v358, 1.442695
    %v360 = vpow.pop %v359
    %v361 = vadd.f32 %v360, 1.0
    %v362 = vrcp.pop %v361
    %v363 = vmul.f32 1.0, %v362
    %v364 = vld [vmem:[#allocation2] sm:$0xff]
    %v365 = vmul.f32 %v356, %v364
    %v366 = vmul.f32 %v350, %v357
    %v367 = vadd.f32 %v365, %v366
    %v368 = vtanh.pop %v367
    %v369 = vmul.f32 %v363, %v368
    %370 = vst [vmem:[#allocation8] sm:$0xff] %v367
    %371 = vst [vmem:[#allocation7] sm:$0xff] %v369
    // Predicated region
    $region26: #{tpu_custom_call.1} parent=1 // pred_check
      _
    $region27: #{tpu_custom_call.1} parent=1 // pred_check_branch
      %373 = sbr.rel (0) target = $region29
    $region28: #{tpu_custom_call.1} parent=1 // pred_region
      %s375 = ssub.s32 128, 128
      %376 = vsyncadd [#allocation4], %s375
      %s378 = sshll.u32 [#allocation7], 4
      %s379 = int_to_ptr.vmem [resolvable:$true] %s378
      %381 = dma.vmem_to_hbm [thread:$0]  %s379, 128, %s4, [#allocation4]
    $region29: #{tpu_custom_call.1} parent=1 // pred_fallthru
      _
    // Predicated region
    $region30: #{tpu_custom_call.1} parent=1 // pred_check
      _
    $region31: #{tpu_custom_call.1} parent=1 // pred_check_branch
      %383 = sbr.rel (0) target = $region33
    $region32: #{tpu_custom_call.1} parent=1 // pred_region
      %s385 = ssub.s32 128, 128
      %386 = vsyncadd [#allocation9], %s385
      %s388 = sshll.u32 [#allocation8], 4
      %s389 = int_to_ptr.vmem [resolvable:$true] %s388
      %391 = dma.vmem_to_hbm [thread:$0]  %s389, 128, %s5, [#allocation9]
    $region33: #{tpu_custom_call.1} parent=1 // pred_fallthru
      _
    // Predicated region
    $region34: #{tpu_custom_call.1} parent=1 // pred_check
      _
    $region35: #{tpu_custom_call.1} parent=1 // pred_check_branch
      %393 = sbr.rel (0) target = $region37
    $region36: #{tpu_custom_call.1} parent=1 // pred_region
      %394 = dma.done [#allocation4], 128
    $region37: #{tpu_custom_call.1} parent=1 // pred_fallthru
      _
    // Predicated region
    $region38: #{tpu_custom_call.1} parent=1 // pred_check
      _
    $region39: #{tpu_custom_call.1} parent=1 // pred_check_branch
      %396 = sbr.rel (0) target = $region41
    $region40: #{tpu_custom_call.1} parent=1 // pred_region
      %397 = dma.done [#allocation9], 128
    $region41: #{tpu_custom_call.1} parent=1 // pred_fallthru
      _
    %398 = vsyncpa [#allocation3], 1
    %399 = vsyncpa [#allocation6], 1
    %400 = vsyncpa [#allocation4], 1
    %401 = vsyncpa [#allocation9], 1

</llo_original>
